<compile_context>
chip_gen: v7x
topology: tpu7x:2x2x1
jax: 0.10.0
libtpu: 0.0.40
codegen_flags: <defaults>
</compile_context>

<pallas_src>
from functools import partial

import jax
import jax.numpy as jnp
from jax import lax
from jax.experimental import pallas as pl
from jax.experimental.pallas import tpu as pltpu

LANES = 128
_MIB = 1024 * 1024


def _round_up(x, m):
    return ((x + m - 1) // m) * m


def _round_down(x, m):
    return (x // m) * m


def _vmem_capacity_bytes():
    """Physical VMEM per core; conservative (v7x-sized) fallback if the query fails."""
    try:
        info = pltpu.get_tpu_info()
        cap = int(getattr(info, "vmem_capacity_bytes", 0) or 0)
        if cap > 0:
            return cap
    except Exception:
        pass
    return 64 * _MIB


def _choose_tiling(n, c, itemsize):
    """Return (tile_rows, chunk_rows, num_tiles, vmem_limit_bytes)."""
    c_pad = _round_up(c, LANES)                       # lane-padded row width in VMEM

    if _vmem_capacity_bytes() <= 64 * _MIB:           # v7x-class: 64 MiB physical VMEM
        per_buf_target = 8 * _MIB
        vmem_limit_cap = 32 * _MIB
    else:                                             # v5e / v6e: 128 MiB physical VMEM
        per_buf_target = 16 * _MIB
        vmem_limit_cap = 64 * _MIB

    # Rows per inner-loop chunk: keeps live f32 intermediates at ~0.5-2 MiB each.
    chunk_rows = _round_down((512 * 1024) // (c_pad * 4), LANES)
    if chunk_rows < LANES and c_pad * 4 * LANES <= 2 * _MIB:
        chunk_rows = LANES                            # moderately wide rows: 128-row chunks
    if chunk_rows >= LANES:
        chunk_rows = max(LANES, min(chunk_rows, _round_up(n, LANES)))
        # Rows per grid step (per pipeline buffer), sized by bytes of the preds tile.
        tile_rows = max(chunk_rows,
                        _round_down(per_buf_target // (c_pad * itemsize), chunk_rows))
    else:
        # Extremely wide rows: single sublane-granular chunk per tile.
        chunk_rows = max(8, min(_round_down(max(8, (2 * _MIB) // (c_pad * 4)), 8),
                                _round_up(n, 8)))
        tile_rows = chunk_rows

    if tile_rows >= n:
        # Whole batch fits in one tile: split in two when sensible so a
        # dual-TensorCore part (v7x) can shard the "parallel" grid axis.
        half = _round_up(-(-n // 2), chunk_rows)
        tile_rows = half if half < n else _round_up(n, chunk_rows)
    num_tiles = -(-n // tile_rows)

    # VMEM accounting with lane/sublane padding (2 pipeline buffers per operand).
    sub = {1: 32, 2: 16, 4: 8}.get(itemsize, 8)
    preds_buf = _round_up(tile_rows, sub) * c_pad * itemsize
    labels_buf = 8 * _round_up(tile_rows, LANES) * 4      # (1, tile_rows) i32 block
    weight_buf = 8 * c_pad * 4
    out_buf = 8 * LANES * 4
    interm = 8 * _round_up(chunk_rows, 8) * c_pad * 4     # generous: chunk-sized f32 temps
    vmem_est = 2 * (preds_buf + labels_buf + weight_buf + out_buf) + interm + 2 * _MIB
    vmem_limit = int(max(8 * _MIB, min(vmem_limit_cap, vmem_est)))
    return tile_rows, chunk_rows, num_tiles, vmem_limit


def _focal_loss_kernel(preds_ref, labels_ref, weight_ref, out_ref, *,
                       gamma, n_total, tile_rows, chunk_rows, mask_rows):
    # preds_ref:  [tile_rows, C]  probabilities, native dtype (f32 / bf16)
    # labels_ref: [1, tile_rows]  int32, lane-dense
    # weight_ref: [1, C]          float32 per-class weights (resident every tile)
    # out_ref:    [1, LANES]      float32 partial sum for this row tile
    eps = jnp.float32(1e-07)
    c = preds_ref.shape[1]
    num_chunks = tile_rows // chunk_rows
    lane_dense = (chunk_rows % LANES == 0)
    groups = chunk_rows // LANES if lane_dense else 0

    weight = weight_ref[...].astype(jnp.float32)                   # [1, C]
    row0 = pl.program_id(0) * tile_rows

    # Loop-invariant column-id plane, hoisted out of the chunk loop (JAX does not
    # CSE broadcast/iota inside the loop body).
    col_ids = lax.broadcasted_iota(jnp.int32, (chunk_rows, c), 1)

    gamma_f = float(gamma)
    gamma_is_int = (gamma_f == float(int(gamma_f))) and int(gamma_f) >= 0

    def chunk_fn(jc, acc):
        r0 = pl.multiple_of(jc * chunk_rows, chunk_rows)
        preds = preds_ref[pl.ds(r0, chunk_rows), :].astype(jnp.float32)  # [chunk, C]
        labels_row = labels_ref[:, pl.ds(r0, chunk_rows)]                # [1, chunk]
        labels_col = labels_row.reshape(chunk_rows, 1)                   # lanes -> sublanes

        col_mask = col_ids == labels_col                                 # [chunk, C]

        # Select labelled probability / class weight per row BEFORE any log/pow,
        # so transcendental work is O(rows), not O(rows * C).
        p_sel = jnp.sum(jnp.where(col_mask, preds, 0.0), axis=1, keepdims=True)
        w_sel = jnp.sum(jnp.where(col_mask, weight, 0.0), axis=1, keepdims=True)

        if lane_dense:
            # Lane-dense per-row layout: (chunk, 1) -> (chunk/128, 128).
            p_sel = p_sel.reshape(groups, LANES)
            w_sel = w_sel.reshape(groups, LANES)

        if mask_rows:
            if lane_dense:
                local = (lax.broadcasted_iota(jnp.int32, (groups, LANES), 0) * LANES
                         + lax.broadcasted_iota(jnp.int32, (groups, LANES), 1))
            else:
                local = lax.broadcasted_iota(jnp.int32, (chunk_rows, 1), 0)
            valid = (row0 + r0 + local) < n_total
            p = jnp.where(valid, p_sel, 1.0)       # keeps log() well defined
            w = jnp.where(valid, w_sel, 0.0)       # zero contribution past the batch
        else:
            p, w = p_sel, w_sel

        ce = -jnp.log(p + eps)
        one_m_p = jnp.maximum(1.0 - p, 0.0)        # guard against dtype-rounding negatives
        if gamma_is_int:
            # Integer gamma (default 2): stay on the VPU with plain multiplies.
            if int(gamma_f) == 0:
                focal = jnp.ones_like(one_m_p)
            else:
                focal = one_m_p
                for _ in range(int(gamma_f) - 1):
                    focal = focal * one_m_p
        else:
            # Non-integer gamma: explicit exp/log pow (EUP), per-row only.
            base = jnp.maximum(one_m_p, jnp.float32(1e-38))
            focal = jnp.exp(jnp.float32(gamma_f) * jnp.log(base))
            focal = jnp.where(one_m_p > 0.0, focal, 0.0)

        return acc + jnp.sum(focal * ce * w)

    if num_chunks == 1:
        total = chunk_fn(jnp.int32(0), jnp.float32(0.0))
    else:
        total = lax.fori_loop(0, num_chunks, chunk_fn, jnp.float32(0.0))

    # Lane-dense output block: full unmasked store.
    out_ref[...] = jnp.full((1, LANES), total, dtype=jnp.float32)


def focal_loss(preds, labels, weight, gamma=2):
    """preds: [N, C] probabilities (any float dtype); labels: [N] int; weight: [C]."""
    n, c = preds.shape
    itemsize = jnp.dtype(preds.dtype).itemsize
    tile_rows, chunk_rows, num_tiles, vmem_limit = _choose_tiling(n, c, itemsize)

    n_pad = num_tiles * tile_rows
    labels_i32 = jnp.asarray(labels, dtype=jnp.int32).reshape(-1)
    if n_pad > n:
        labels_i32 = jnp.pad(labels_i32, (0, n_pad - n))
    labels_2d = labels_i32.reshape(num_tiles, tile_rows)        # lane-dense labels
    weight_2d = jnp.asarray(weight, dtype=jnp.float32).reshape(1, c)

    kernel = partial(_focal_loss_kernel, gamma=gamma, n_total=n,
                     tile_rows=tile_rows, chunk_rows=chunk_rows,
                     mask_rows=(n % tile_rows != 0))

    # NOTE: pipeline_mode=pl.Buffered(3) on the preds spec is a cheap follow-up sweep
    # on v7x if a trace still shows exposed DMA after these tile sizes.
    partials = pl.pallas_call(
        kernel,
        out_shape=jax.ShapeDtypeStruct((num_tiles, LANES), jnp.float32),
        grid=(num_tiles,),
        in_specs=[
            pl.BlockSpec((tile_rows, c), lambda i: (i, 0)),     # preds, native dtype
            pl.BlockSpec((1, tile_rows), lambda i: (i, 0)),     # labels, lane-dense
            pl.BlockSpec((1, c), lambda i: (0, 0)),             # class weights, resident
        ],
        out_specs=pl.BlockSpec((1, LANES), lambda i: (i, 0)),
        compiler_params=pltpu.CompilerParams(
            dimension_semantics=("parallel",),                  # independent row tiles
            vmem_limit_bytes=vmem_limit,
        ),
    )(preds, labels_2d, weight_2d)

    # Tiny epilogue reduction outside the kernel keeps the grid axis fully parallel.
    return jnp.sum(partials[:, 0]) / jnp.float32(n)


def focal_loss_ref(preds, labels, weight, gamma=2):
    """Pure-JAX reference matching the PyTorch module."""
    eps = 1e-07
    n, c = preds.shape
    preds = preds.astype(jnp.float32)
    target = jax.nn.one_hot(labels, c, dtype=jnp.float32)
    ce = -jnp.log(preds + eps) * target
    floss = jnp.power(1.0 - preds, float(gamma)) * ce
    floss = floss * weight.astype(jnp.float32).reshape(1, c)
    return jnp.mean(jnp.sum(floss, axis=1))


if __name__ == "__main__":
    key = jax.random.PRNGKey(0)
    k1, k2, k3, k4, k5, k6 = jax.random.split(key, 6)

    # Case 1: small f32 batch (single tile, single chunk, padded rows masked).
    N1, C1 = 8, 32
    preds1 = jax.nn.softmax(jax.random.normal(k1, (N1, C1), jnp.float32), axis=1)
    labels1 = jax.random.randint(k2, (N1,), 0, C1, dtype=jnp.int32)
    weight1 = jnp.linspace(0.5, 1.5, C1, dtype=jnp.float32)
    out1 = jax.block_until_ready(focal_loss(preds1, labels1, weight1, gamma=2))
    ref1 = focal_loss_ref(preds1, labels1, weight1, gamma=2)
    assert jnp.allclose(out1, ref1, rtol=2e-5, atol=1e-5), (out1, ref1)

    # Case 2: bf16 probabilities streamed natively, N not a multiple of 8.
    N2, C2 = 6, 16
    preds2 = jax.nn.softmax(jax.random.normal(k3, (N2, C2), jnp.float32),
                            axis=1).astype(jnp.bfloat16)
    labels2 = jax.random.randint(k4, (N2,), 0, C2, dtype=jnp.int32)
    weight2 = jnp.linspace(0.75, 1.25, C2, dtype=jnp.float32)
    out2 = jax.block_until_ready(focal_loss(preds2, labels2, weight2, gamma=2))
    ref2 = focal_loss_ref(preds2.astype(jnp.float32), labels2, weight2, gamma=2)
    assert jnp.allclose(out2, ref2, rtol=2e-5, atol=1e-5), (out2, ref2)

    # Case 3: multi-tile grid, multi-chunk inner loop, partial last tile;
    # also exercises the non-integer-gamma path.
    N3, C3 = 2500, 32
    preds3 = jax.nn.softmax(jax.random.normal(k5, (N3, C3), jnp.float32), axis=1)
    labels3 = jax.random.randint(k6, (N3,), 0, C3, dtype=jnp.int32)
    weight3 = jnp.linspace(0.25, 1.75, C3, dtype=jnp.float32)
    out3 = jax.block_until_ready(focal_loss(preds3, labels3, weight3, gamma=2))
    ref3 = focal_loss_ref(preds3, labels3, weight3, gamma=2)
    assert jnp.allclose(out3, ref3, rtol=2e-5, atol=1e-5), (out3, ref3)

    out3b = jax.block_until_ready(focal_loss(preds3, labels3, weight3, gamma=1.5))
    ref3b = focal_loss_ref(preds3, labels3, weight3, gamma=1.5)
    assert jnp.allclose(out3b, ref3b, rtol=2e-5, atol=1e-5), (out3b, ref3b)

    print("KERNEL_OK")
</pallas_src>

<mosaic_0001>
module attributes {stable_mosaic.version = 11 : i64} {
  func.func @_focal_loss_kernel(%arg0: i32, %arg1: memref<128x32xf32, #tpu.memory_space<vmem>>, %arg2: memref<1x128xi32, #tpu.memory_space<vmem>>, %arg3: memref<1x32xf32, #tpu.memory_space<vmem>>, %arg4: memref<1x128xf32, #tpu.memory_space<vmem>>) attributes {dimension_semantics = [#tpu.dimension_semantics<parallel>], iteration_bounds = array<i64: 1>, scalar_prefetch = 0 : i64, scratch_operands = 0 : i64, tpu.core_type = #tpu.core_type<tc>, window_params = [{transform_indices = @transform_0, window_bounds = array<i64: 128, 32>}, {transform_indices = @transform_1, window_bounds = array<i64: 1, 128>}, {pipeline_mode = #tpu.pipeline_mode<synchronous>, transform_indices = @transform_2, window_bounds = array<i64: 1, 32>}, {transform_indices = @transform_3, window_bounds = array<i64: 1, 128>}]} {
    %c0 = arith.constant 0 : index
    %c0_0 = arith.constant 0 : index
    %0 = vector.load %arg3[%c0, %c0_0] : memref<1x32xf32, #tpu.memory_space<vmem>>, vector<1x32xf32>
    %c128_i32 = arith.constant 128 : i32
    %1 = arith.muli %arg0, %c128_i32 : i32
    %2 = tpu.iota {dimensions = array<i32: 1>} : vector<128x32xi32>
    %c0_i32 = arith.constant 0 : i32
    %c128_i32_1 = arith.constant 128 : i32
    %3 = arith.muli %c0_i32, %c128_i32_1 : i32
    %4 = tpu.assume_multiple %3, 128 : i32
    %5 = arith.index_cast %4 : i32 to index
    %c0_2 = arith.constant 0 : index
    %6 = vector.load %arg1[%5, %c0_2] : memref<128x32xf32, #tpu.memory_space<vmem>>, vector<128x32xf32>
    %c0_3 = arith.constant 0 : index
    %7 = arith.index_cast %4 : i32 to index
    %8 = vector.load %arg2[%c0_3, %7] : memref<1x128xi32, #tpu.memory_space<vmem>>, vector<1x128xi32>
    %9 = vector.shape_cast %8 : vector<1x128xi32> to vector<128x1xi32>
    %10 = vector.broadcast %9 : vector<128x1xi32> to vector<128x32xi32>
    %11 = arith.cmpi eq, %2, %10 : vector<128x32xi32>
    %cst = arith.constant 0.000000e+00 : f32
    %12 = vector.broadcast %cst : f32 to vector<128x32xf32>
    %13 = arith.select %11, %6, %12 : vector<128x32xi1>, vector<128x32xf32>
    %cst_4 = arith.constant dense<0.000000e+00> : vector<128xf32>
    %14 = vector.multi_reduction <add>, %13, %cst_4 [1] : vector<128x32xf32> to vector<128xf32>
    %15 = vector.shape_cast %14 : vector<128xf32> to vector<128x1xf32>
    %cst_5 = arith.constant 0.000000e+00 : f32
    %16 = vector.shape_cast %0 : vector<1x32xf32> to vector<1x32xf32>
    %17 = vector.broadcast %16 : vector<1x32xf32> to vector<128x32xf32>
    %18 = vector.broadcast %cst_5 : f32 to vector<128x32xf32>
    %19 = arith.select %11, %17, %18 : vector<128x32xi1>, vector<128x32xf32>
    %cst_6 = arith.constant dense<0.000000e+00> : vector<128xf32>
    %20 = vector.multi_reduction <add>, %19, %cst_6 [1] : vector<128x32xf32> to vector<128xf32>
    %21 = vector.shape_cast %20 : vector<128xf32> to vector<128x1xf32>
    %22 = vector.shape_cast %15 : vector<128x1xf32> to vector<1x128xf32>
    %23 = vector.shape_cast %21 : vector<128x1xf32> to vector<1x128xf32>
    %24 = tpu.iota {dimensions = array<i32: 0>} : vector<1x128xi32>
    %c128_i32_7 = arith.constant 128 : i32
    %25 = vector.broadcast %c128_i32_7 : i32 to vector<1x128xi32>
    %26 = arith.muli %24, %25 : vector<1x128xi32>
    %27 = tpu.iota {dimensions = array<i32: 1>} : vector<1x128xi32>
    %28 = arith.addi %26, %27 : vector<1x128xi32>
    %29 = arith.addi %1, %4 : i32
    %30 = vector.broadcast %29 : i32 to vector<1x128xi32>
    %31 = arith.addi %30, %28 : vector<1x128xi32>
    %c8_i32 = arith.constant 8 : i32
    %32 = vector.broadcast %c8_i32 : i32 to vector<1x128xi32>
    %33 = arith.cmpi slt, %31, %32 : vector<1x128xi32>
    %cst_8 = arith.constant 1.000000e+00 : f32
    %34 = vector.broadcast %cst_8 : f32 to vector<1x128xf32>
    %35 = arith.select %33, %22, %34 : vector<1x128xi1>, vector<1x128xf32>
    %cst_9 = arith.constant 0.000000e+00 : f32
    %36 = vector.broadcast %cst_9 : f32 to vector<1x128xf32>
    %37 = arith.select %33, %23, %36 : vector<1x128xi1>, vector<1x128xf32>
    %cst_10 = arith.constant 1.000000e-07 : f32
    %38 = vector.broadcast %cst_10 : f32 to vector<1x128xf32>
    %39 = arith.addf %35, %38 : vector<1x128xf32>
    %40 = math.log %39 : vector<1x128xf32>
    %cst_11 = arith.constant 0.000000e+00 : f32
    %41 = vector.broadcast %cst_11 : f32 to vector<1x128xf32>
    %42 = arith.subf %41, %40 : vector<1x128xf32>
    %cst_12 = arith.constant 1.000000e+00 : f32
    %43 = vector.broadcast %cst_12 : f32 to vector<1x128xf32>
    %44 = arith.subf %43, %35 : vector<1x128xf32>
    %cst_13 = arith.constant 0.000000e+00 : f32
    %45 = vector.broadcast %cst_13 : f32 to vector<1x128xf32>
    %46 = arith.maximumf %44, %45 : vector<1x128xf32>
    %47 = arith.mulf %46, %46 : vector<1x128xf32>
    %48 = arith.mulf %47, %42 : vector<1x128xf32>
    %49 = arith.mulf %48, %37 : vector<1x128xf32>
    %50 = vector.shape_cast %49 : vector<1x128xf32> to vector<1x1x128xf32>
    %cst_14 = arith.constant dense<0.000000e+00> : vector<1xf32>
    %51 = vector.multi_reduction <add>, %50, %cst_14 [1, 2] : vector<1x1x128xf32> to vector<1xf32>
    %52 = vector.shape_cast %51 : vector<1xf32> to vector<1x1x1xf32>
    %53 = vector.extract %52[0, 0, 0] : f32 from vector<1x1x1xf32>
    %cst_15 = arith.constant 0.000000e+00 : f32
    %54 = arith.addf %cst_15, %53 : f32
    %55 = vector.broadcast %54 : f32 to vector<1x128xf32>
    %c0_16 = arith.constant 0 : index
    %c0_17 = arith.constant 0 : index
    %56 = vector.load %arg4[%c0_16, %c0_17] : memref<1x128xf32, #tpu.memory_space<vmem>>, vector<1x128xf32>
    tpu.vector_store %arg4[%c0_16, %c0_17], %55 {strides = array<i32>} : memref<1x128xf32, #tpu.memory_space<vmem>>, vector<1x128xf32>,
    return
  }
  func.func @transform_0(%arg0: i32) -> (i32, i32) {
    %c0_i32 = arith.constant 0 : i32
    %c0_i32_0 = arith.constant 0 : i32
    return %arg0, %c0_i32 : i32, i32
  }
  func.func @transform_1(%arg0: i32) -> (i32, i32) {
    %c0_i32 = arith.constant 0 : i32
    %c0_i32_0 = arith.constant 0 : i32
    return %arg0, %c0_i32 : i32, i32
  }
  func.func @transform_2(%arg0: i32) -> (i32, i32) {
    %c0_i32 = arith.constant 0 : i32
    %c0_i32_0 = arith.constant 0 : i32
    %c0_i32_1 = arith.constant 0 : i32
    return %c0_i32, %c0_i32_0 : i32, i32
  }
  func.func @transform_3(%arg0: i32) -> (i32, i32) {
    %c0_i32 = arith.constant 0 : i32
    %c0_i32_0 = arith.constant 0 : i32
    return %arg0, %c0_i32 : i32, i32
  }
}

</mosaic_0001>

<llo_original>
// kernel: tpu_custom_call.1
$region0: #{tpu_custom_call.1}
  #allocation0 [shape = 'u32[]', space=smem, size = 0x4, offset = 0x4, fixed_abs, tag = 'smem constant byte address 0x4 - core index']
  #allocation1 [shape = 'u32[144,128]{1,0:T(1,128)}', space=vmem, size = 0x12000, scoped, tag = 'internal scratch']
  %s0 = inlined_call_operand.hbm [shape: f32[8,32], index: 0, kind: input, shape index: {}]
  %s1 = inlined_call_operand.vmem [shape: s32[1,128], index: 1, kind: input, shape index: {}]
  %s2 = inlined_call_operand.vmem [shape: f32[1,32], index: 2, kind: input, shape index: {}]
  %s3 = inlined_call_operand.hbm [shape: f32[1,128], index: 3, kind: output, shape index: {}]
  %s4 = sld [smem:[#allocation0]]
  $region26: #{tpu_custom_call.1} parent=0
    _
  %s6 = ssub.s32 1, %s4
  %s7 = scalar_select 0, %s6, %s4
  $region1: #{tpu_custom_call.1} parent=0
    #allocation2 [shape = 'u8[65536]{0}', space=vmem, size = 0x10000, scoped, tag = 'input window, operand 0, single buffered']
    #allocation3 [shape = 's32[1]{0}', space=sflag, size = 0x4, scoped, tag = 'scoped memory for tpu_custom_call.1']
    #allocation4 [shape = 's32[1]{0}', space=sflag, size = 0x4, scoped, tag = 'scoped memory for tpu_custom_call.1']
    #allocation5 [shape = 'u8[512]{0}', space=vmem, size = 0x400, scoped, tag = 'output window, operand 0, single buffered']
    %8 = vsyncpa [#allocation3], 0
    %9 = vsyncpa [#allocation4], 0
    // Predicated region
    $region2: #{tpu_custom_call.1} parent=1 // pred_check
      _
    $region3: #{tpu_custom_call.1} parent=1 // pred_check_branch
      %11 = sbr.rel (0) target = $region5
    $region4: #{tpu_custom_call.1} parent=1 // pred_region
      %s13 = ssub.s32 2048, 128
      %14 = vsyncadd [#allocation3], %s13
      %s15 = sshll.u32 [#allocation2], 4
      %s16 = int_to_ptr.vmem [resolvable:$true] %s15
      %21 = dma.hbm_to_vmem [thread:$0]  %s0, 128, %s16, [#allocation3], 128, 128, 8
    $region5: #{tpu_custom_call.1} parent=1 // pred_fallthru
      _
    // Predicated region
    $region6: #{tpu_custom_call.1} parent=1 // pred_check
      _
    $region7: #{tpu_custom_call.1} parent=1 // pred_check_branch
      %23 = sbr.rel (0) target = $region9
    $region8: #{tpu_custom_call.1} parent=1 // pred_region
      _
    $region9: #{tpu_custom_call.1} parent=1 // pred_fallthru
      _
    // Predicated region
    $region10: #{tpu_custom_call.1} parent=1 // pred_check
      _
    $region11: #{tpu_custom_call.1} parent=1 // pred_check_branch
      %25 = sbr.rel (0) target = $region13
    $region12: #{tpu_custom_call.1} parent=1 // pred_region
      _
    $region13: #{tpu_custom_call.1} parent=1 // pred_fallthru
      _
    // Predicated region
    $region14: #{tpu_custom_call.1} parent=1 // pred_check
      _
    $region15: #{tpu_custom_call.1} parent=1 // pred_check_branch
      %27 = sbr.rel (0) target = $region17
    $region16: #{tpu_custom_call.1} parent=1 // pred_region
      %28 = dma.done [#allocation3], 2048
    $region17: #{tpu_custom_call.1} parent=1 // pred_fallthru
      _
    %v29 = vld [vmem:[%s2] sm:$0x1]
    %s30 = smul.u32 0, 128
    %v31 = vlaneseq
    %v32 = vand.u32 %v31, 127
    %v33 = vld [vmem:[#allocation2] sm:$0xff]
    %v34 = vld [vmem:[#allocation2 + $0x8] sm:$0xff]
    %v35 = vld [vmem:[#allocation2 + $0x10] sm:$0xff]
    %v36 = vld [vmem:[#allocation2 + $0x18] sm:$0xff]
    %v37 = vld [vmem:[#allocation2 + $0x20] sm:$0xff]
    %v38 = vld [vmem:[#allocation2 + $0x28] sm:$0xff]
    %v39 = vld [vmem:[#allocation2 + $0x30] sm:$0xff]
    %v40 = vld [vmem:[#allocation2 + $0x38] sm:$0xff]
    %v41 = vld [vmem:[#allocation2 + $0x40] sm:$0xff]
    %v42 = vld [vmem:[#allocation2 + $0x48] sm:$0xff]
    %v43 = vld [vmem:[#allocation2 + $0x50] sm:$0xff]
    %v44 = vld [vmem:[#allocation2 + $0x58] sm:$0xff]
    %v45 = vld [vmem:[#allocation2 + $0x60] sm:$0xff]
    %v46 = vld [vmem:[#allocation2 + $0x68] sm:$0xff]
    %v47 = vld [vmem:[#allocation2 + $0x70] sm:$0xff]
    %v48 = vld [vmem:[#allocation2 + $0x78] sm:$0xff]
    %v49 = vld [vmem:[%s1] sm:$0x1]
    %v50 = vlaneseq
    %v51 = vshrl.u32 %v50, 7
    %v52 = vsub.s32 0, %v51
    %v53 = vrot.slane %v49, %v52
    %55 = vbcast.lane.b32.xlu0 %v53, 256
    %v56 = vpop.permute.xlu0 %55
    %s58 = sor.u32 256, 8
    %59 = vbcast.lane.b32.xlu0 %v53, %s58
    %v60 = vpop.permute.xlu0 %59
    %s62 = sor.u32 256, 16
    %63 = vbcast.lane.b32.xlu0 %v53, %s62
    %v64 = vpop.permute.xlu0 %63
    %s66 = sor.u32 256, 24
    %67 = vbcast.lane.b32.xlu0 %v53, %s66
    %v68 = vpop.permute.xlu0 %67
    %s70 = sor.u32 256, 32
    %71 = vbcast.lane.b32.xlu0 %v53, %s70
    %v72 = vpop.permute.xlu0 %71
    %s74 = sor.u32 256, 40
    %75 = vbcast.lane.b32.xlu0 %v53, %s74
    %v76 = vpop.permute.xlu0 %75
    %s78 = sor.u32 256, 48
    %79 = vbcast.lane.b32.xlu0 %v53, %s78
    %v80 = vpop.permute.xlu0 %79
    %s82 = sor.u32 256, 56
    %83 = vbcast.lane.b32.xlu0 %v53, %s82
    %v84 = vpop.permute.xlu0 %83
    %s86 = sor.u32 256, 64
    %87 = vbcast.lane.b32.xlu0 %v53, %s86
    %v88 = vpop.permute.xlu0 %87
    %s90 = sor.u32 256, 72
    %91 = vbcast.lane.b32.xlu0 %v53, %s90
    %v92 = vpop.permute.xlu0 %91
    %s94 = sor.u32 256, 80
    %95 = vbcast.lane.b32.xlu0 %v53, %s94
    %v96 = vpop.permute.xlu0 %95
    %s98 = sor.u32 256, 88
    %99 = vbcast.lane.b32.xlu0 %v53, %s98
    %v100 = vpop.permute.xlu0 %99
    %s102 = sor.u32 256, 96
    %103 = vbcast.lane.b32.xlu0 %v53, %s102
    %v104 = vpop.permute.xlu0 %103
    %s106 = sor.u32 256, 104
    %107 = vbcast.lane.b32.xlu0 %v53, %s106
    %v108 = vpop.permute.xlu0 %107
    %s110 = sor.u32 256, 112
    %111 = vbcast.lane.b32.xlu0 %v53, %s110
    %v112 = vpop.permute.xlu0 %111
    %s114 = sor.u32 256, 120
    %115 = vbcast.lane.b32.xlu0 %v53, %s114
    %v116 = vpop.permute.xlu0 %115
    %vm117 = vcmp.eq.s32.totalorder %v32, %v56
    %vm118 = vcmp.eq.s32.totalorder %v32, %v60
    %vm119 = vcmp.eq.s32.totalorder %v32, %v64
    %vm120 = vcmp.eq.s32.totalorder %v32, %v68
    %vm121 = vcmp.eq.s32.totalorder %v32, %v72
    %vm122 = vcmp.eq.s32.totalorder %v32, %v76
    %vm123 = vcmp.eq.s32.totalorder %v32, %v80
    %vm124 = vcmp.eq.s32.totalorder %v32, %v84
    %vm125 = vcmp.eq.s32.totalorder %v32, %v88
    %vm126 = vcmp.eq.s32.totalorder %v32, %v92
    %vm127 = vcmp.eq.s32.totalorder %v32, %v96
    %vm128 = vcmp.eq.s32.totalorder %v32, %v100
    %vm129 = vcmp.eq.s32.totalorder %v32, %v104
    %vm130 = vcmp.eq.s32.totalorder %v32, %v108
    %vm131 = vcmp.eq.s32.totalorder %v32, %v112
    %vm132 = vcmp.eq.s32.totalorder %v32, %v116
    %v133 = vsel %vm117, %v33, 0.0
    %v134 = vsel %vm118, %v34, 0.0
    %v135 = vsel %vm119, %v35, 0.0
    %v136 = vsel %vm120, %v36, 0.0
    %v137 = vsel %vm121, %v37, 0.0
    %v138 = vsel %vm122, %v38, 0.0
    %v139 = vsel %vm123, %v39, 0.0
    %v140 = vsel %vm124, %v40, 0.0
    %v141 = vsel %vm125, %v41, 0.0
    %v142 = vsel %vm126, %v42, 0.0
    %v143 = vsel %vm127, %v43, 0.0
    %v144 = vsel %vm128, %v44, 0.0
    %v145 = vsel %vm129, %v45, 0.0
    %v146 = vsel %vm130, %v46, 0.0
    %v147 = vsel %vm131, %v47, 0.0
    %v148 = vsel %vm132, %v48, 0.0
    %vm149 = vcmask 261120
    %v150 = vsel %vm149, %v133, 0.0
    %151 = vadd.xlane.f32.xlu0 %v150
    %v152 = vpop.xlane.xlu0 %151
    %v153 = vsel %vm149, %v134, 0.0
    %154 = vadd.xlane.f32.xlu0 %v153
    %v155 = vpop.xlane.xlu0 %154
    %v156 = vsel %vm149, %v135, 0.0
    %157 = vadd.xlane.f32.xlu0 %v156
    %v158 = vpop.xlane.xlu0 %157
    %v159 = vsel %vm149, %v136, 0.0
    %160 = vadd.xlane.f32.xlu0 %v159
    %v161 = vpop.xlane.xlu0 %160
    %v162 = vsel %vm149, %v137, 0.0
    %163 = vadd.xlane.f32.xlu0 %v162
    %v164 = vpop.xlane.xlu0 %163
    %v165 = vsel %vm149, %v138, 0.0
    %166 = vadd.xlane.f32.xlu0 %v165
    %v167 = vpop.xlane.xlu0 %166
    %v168 = vsel %vm149, %v139, 0.0
    %169 = vadd.xlane.f32.xlu0 %v168
    %v170 = vpop.xlane.xlu0 %169
    %v171 = vsel %vm149, %v140, 0.0
    %172 = vadd.xlane.f32.xlu0 %v171
    %v173 = vpop.xlane.xlu0 %172
    %v174 = vsel %vm149, %v141, 0.0
    %175 = vadd.xlane.f32.xlu0 %v174
    %v176 = vpop.xlane.xlu0 %175
    %v177 = vsel %vm149, %v142, 0.0
    %178 = vadd.xlane.f32.xlu0 %v177
    %v179 = vpop.xlane.xlu0 %178
    %v180 = vsel %vm149, %v143, 0.0
    %181 = vadd.xlane.f32.xlu0 %v180
    %v182 = vpop.xlane.xlu0 %181
    %v183 = vsel %vm149, %v144, 0.0
    %184 = vadd.xlane.f32.xlu0 %v183
    %v185 = vpop.xlane.xlu0 %184
    %v186 = vsel %vm149, %v145, 0.0
    %187 = vadd.xlane.f32.xlu0 %v186
    %v188 = vpop.xlane.xlu0 %187
    %v189 = vsel %vm149, %v146, 0.0
    %190 = vadd.xlane.f32.xlu0 %v189
    %v191 = vpop.xlane.xlu0 %190
    %v192 = vsel %vm149, %v147, 0.0
    %193 = vadd.xlane.f32.xlu0 %v192
    %v194 = vpop.xlane.xlu0 %193
    %v195 = vsel %vm149, %v148, 0.0
    %196 = vadd.xlane.f32.xlu0 %v195
    %v197 = vpop.xlane.xlu0 %196
    %v199 = vlaneseq
    %v200 = vshrl.u32 %v199, 7
    %v201 = vsub.s32 0, %v200
    %v202 = vrot.slane %v29, %v201
    %v204 = vsel %vm117, %v202, 0.0
    %v205 = vsel %vm118, %v202, 0.0
    %v206 = vsel %vm119, %v202, 0.0
    %v207 = vsel %vm120, %v202, 0.0
    %v208 = vsel %vm121, %v202, 0.0
    %v209 = vsel %vm122, %v202, 0.0
    %v210 = vsel %vm123, %v202, 0.0
    %v211 = vsel %vm124, %v202, 0.0
    %v212 = vsel %vm125, %v202, 0.0
    %v213 = vsel %vm126, %v202, 0.0
    %v214 = vsel %vm127, %v202, 0.0
    %v215 = vsel %vm128, %v202, 0.0
    %v216 = vsel %vm129, %v202, 0.0
    %v217 = vsel %vm130, %v202, 0.0
    %v218 = vsel %vm131, %v202, 0.0
    %v219 = vsel %vm132, %v202, 0.0
    %v220 = vsel %vm149, %v204, 0.0
    %221 = vadd.xlane.f32.xlu0 %v220
    %v222 = vpop.xlane.xlu0 %221
    %v223 = vsel %vm149, %v205, 0.0
    %224 = vadd.xlane.f32.xlu0 %v223
    %v225 = vpop.xlane.xlu0 %224
    %v226 = vsel %vm149, %v206, 0.0
    %227 = vadd.xlane.f32.xlu0 %v226
    %v228 = vpop.xlane.xlu0 %227
    %v229 = vsel %vm149, %v207, 0.0
    %230 = vadd.xlane.f32.xlu0 %v229
    %v231 = vpop.xlane.xlu0 %230
    %v232 = vsel %vm149, %v208, 0.0
    %233 = vadd.xlane.f32.xlu0 %v232
    %v234 = vpop.xlane.xlu0 %233
    %v235 = vsel %vm149, %v209, 0.0
    %236 = vadd.xlane.f32.xlu0 %v235
    %v237 = vpop.xlane.xlu0 %236
    %v238 = vsel %vm149, %v210, 0.0
    %239 = vadd.xlane.f32.xlu0 %v238
    %v240 = vpop.xlane.xlu0 %239
    %v241 = vsel %vm149, %v211, 0.0
    %242 = vadd.xlane.f32.xlu0 %v241
    %v243 = vpop.xlane.xlu0 %242
    %v244 = vsel %vm149, %v212, 0.0
    %245 = vadd.xlane.f32.xlu0 %v244
    %v246 = vpop.xlane.xlu0 %245
    %v247 = vsel %vm149, %v213, 0.0
    %248 = vadd.xlane.f32.xlu0 %v247
    %v249 = vpop.xlane.xlu0 %248
    %v250 = vsel %vm149, %v214, 0.0
    %251 = vadd.xlane.f32.xlu0 %v250
    %v252 = vpop.xlane.xlu0 %251
    %v253 = vsel %vm149, %v215, 0.0
    %254 = vadd.xlane.f32.xlu0 %v253
    %v255 = vpop.xlane.xlu0 %254
    %v256 = vsel %vm149, %v216, 0.0
    %257 = vadd.xlane.f32.xlu0 %v256
    %v258 = vpop.xlane.xlu0 %257
    %v259 = vsel %vm149, %v217, 0.0
    %260 = vadd.xlane.f32.xlu0 %v259
    %v261 = vpop.xlane.xlu0 %260
    %v262 = vsel %vm149, %v218, 0.0
    %263 = vadd.xlane.f32.xlu0 %v262
    %v264 = vpop.xlane.xlu0 %263
    %v265 = vsel %vm149, %v219, 0.0
    %266 = vadd.xlane.f32.xlu0 %v265
    %v267 = vpop.xlane.xlu0 %266
    %v268 = vlaneseq
    %v269 = vshrl.u32 %v268, 7
    %v270 = vmul.u32 %v269, 128
    %v271 = vadd.s32 %v270, %v32
    %s272 = sadd.s32 %s30, 0
    %v273 = vstv %s272
    %v274 = vadd.s32 %v273, %v271
    %vm275 = vcmp.lt.s32.totalorder %v274, 8
    %v292 = vlaneseq
    %v293 = vshrl.u32 %v292, 7
    %v294 = vsub.s32 %v32, %v293
    %v295 = vrot.slane %v152, %v294
    %v296 = vadd.s32 %v32, 4294967288
    %v297 = vlaneseq
    %v298 = vshrl.u32 %v297, 7
    %v299 = vsub.s32 %v296, %v298
    %v300 = vrot.slane %v155, %v299
    %vm301 = vcmask 130112
    %v302 = vsel %vm301, %v300, %v295
    %v303 = vadd.s32 %v32, 4294967280
    %v304 = vlaneseq
    %v305 = vshrl.u32 %v304, 7
    %v306 = vsub.s32 %v303, %v305
    %v307 = vrot.slane %v158, %v306
    %vm308 = vcmask 195712
    %v309 = vsel %vm308, %v307, %v302
    %v310 = vadd.s32 %v32, 4294967272
    %v311 = vlaneseq
    %v312 = vshrl.u32 %v311, 7
    %v313 = vsub.s32 %v310, %v312
    %v314 = vrot.slane %v161, %v313
    %vm315 = vcmask 261312
    %v316 = vsel %vm315, %v314, %v309
    %v317 = vadd.s32 %v32, 4294967264
    %v318 = vlaneseq
    %v319 = vshrl.u32 %v318, 7
    %v320 = vsub.s32 %v317, %v319
    %v321 = vrot.slane %v164, %v320
    %vm322 = vcmask 326912
    %v323 = vsel %vm322, %v321, %v316
    %v324 = vadd.s32 %v32, 4294967256
    %v325 = vlaneseq
    %v326 = vshrl.u32 %v325, 7
    %v327 = vsub.s32 %v324, %v326
    %v328 = vrot.slane %v167, %v327
    %vm329 = vcmask 392512
    %v330 = vsel %vm329, %v328, %v323
    %v331 = vadd.s32 %v32, 4294967248
    %v332 = vlaneseq
    %v333 = vshrl.u32 %v332, 7
    %v334 = vsub.s32 %v331, %v333
    %v335 = vrot.slane %v170, %v334
    %vm336 = vcmask 458112
    %v337 = vsel %vm336, %v335, %v330
    %v338 = vadd.s32 %v32, 4294967240
    %v339 = vlaneseq
    %v340 = vshrl.u32 %v339, 7
    %v341 = vsub.s32 %v338, %v340
    %v342 = vrot.slane %v173, %v341
    %vm343 = vcmask 523712
    %v344 = vsel %vm343, %v342, %v337
    %v345 = vadd.s32 %v32, 4294967232
    %v346 = vlaneseq
    %v347 = vshrl.u32 %v346, 7
    %v348 = vsub.s32 %v345, %v347
    %v349 = vrot.slane %v176, %v348
    %vm350 = vcmask 589312
    %v351 = vsel %vm350, %v349, %v344
    %v352 = vadd.s32 %v32, 4294967224
    %v353 = vlaneseq
    %v354 = vshrl.u32 %v353, 7
    %v355 = vsub.s32 %v352, %v354
    %v356 = vrot.slane %v179, %v355
    %vm357 = vcmask 654912
    %v358 = vsel %vm357, %v356, %v351
    %v359 = vadd.s32 %v32, 4294967216
    %v360 = vlaneseq
    %v361 = vshrl.u32 %v360, 7
    %v362 = vsub.s32 %v359, %v361
    %v363 = vrot.slane %v182, %v362
    %vm364 = vcmask 720512
    %v365 = vsel %vm364, %v363, %v358
    %v366 = vadd.s32 %v32, 4294967208
    %v367 = vlaneseq
    %v368 = vshrl.u32 %v367, 7
    %v369 = vsub.s32 %v366, %v368
    %v370 = vrot.slane %v185, %v369
    %vm371 = vcmask 786112
    %v372 = vsel %vm371, %v370, %v365
    %v373 = vadd.s32 %v32, 4294967200
    %v374 = vlaneseq
    %v375 = vshrl.u32 %v374, 7
    %v376 = vsub.s32 %v373, %v375
    %v377 = vrot.slane %v188, %v376
    %vm378 = vcmask 851712
    %v379 = vsel %vm378, %v377, %v372
    %v380 = vadd.s32 %v32, 4294967192
    %v381 = vlaneseq
    %v382 = vshrl.u32 %v381, 7
    %v383 = vsub.s32 %v380, %v382
    %v384 = vrot.slane %v191, %v383
    %vm385 = vcmask 917312
    %v386 = vsel %vm385, %v384, %v379
    %v387 = vadd.s32 %v32, 4294967184
    %v388 = vlaneseq
    %v389 = vshrl.u32 %v388, 7
    %v390 = vsub.s32 %v387, %v389
    %v391 = vrot.slane %v194, %v390
    %vm392 = vcmask 982912
    %v393 = vsel %vm392, %v391, %v386
    %v394 = vadd.s32 %v32, 4294967176
    %v395 = vlaneseq
    %v396 = vshrl.u32 %v395, 7
    %v397 = vsub.s32 %v394, %v396
    %v398 = vrot.slane %v197, %v397
    %vm399 = vcmask 1048512
    %v400 = vsel %vm399, %v398, %v393
    %v402 = vsel %vm275, %v400, 1.0
    %v419 = vlaneseq
    %v420 = vshrl.u32 %v419, 7
    %v421 = vsub.s32 %v32, %v420
    %v422 = vrot.slane %v222, %v421
    %v423 = vlaneseq
    %v424 = vshrl.u32 %v423, 7
    %v425 = vsub.s32 %v296, %v424
    %v426 = vrot.slane %v225, %v425
    %v427 = vsel %vm301, %v426, %v422
    %v428 = vlaneseq
    %v429 = vshrl.u32 %v428, 7
    %v430 = vsub.s32 %v303, %v429
    %v431 = vrot.slane %v228, %v430
    %v432 = vsel %vm308, %v431, %v427
    %v433 = vlaneseq
    %v434 = vshrl.u32 %v433, 7
    %v435 = vsub.s32 %v310, %v434
    %v436 = vrot.slane %v231, %v435
    %v437 = vsel %vm315, %v436, %v432
    %v438 = vlaneseq
    %v439 = vshrl.u32 %v438, 7
    %v440 = vsub.s32 %v317, %v439
    %v441 = vrot.slane %v234, %v440
    %v442 = vsel %vm322, %v441, %v437
    %v443 = vlaneseq
    %v444 = vshrl.u32 %v443, 7
    %v445 = vsub.s32 %v324, %v444
    %v446 = vrot.slane %v237, %v445
    %v447 = vsel %vm329, %v446, %v442
    %v448 = vlaneseq
    %v449 = vshrl.u32 %v448, 7
    %v450 = vsub.s32 %v331, %v449
    %v451 = vrot.slane %v240, %v450
    %v452 = vsel %vm336, %v451, %v447
    %v453 = vlaneseq
    %v454 = vshrl.u32 %v453, 7
    %v455 = vsub.s32 %v338, %v454
    %v456 = vrot.slane %v243, %v455
    %v457 = vsel %vm343, %v456, %v452
    %v458 = vlaneseq
    %v459 = vshrl.u32 %v458, 7
    %v460 = vsub.s32 %v345, %v459
    %v461 = vrot.slane %v246, %v460
    %v462 = vsel %vm350, %v461, %v457
    %v463 = vlaneseq
    %v464 = vshrl.u32 %v463, 7
    %v465 = vsub.s32 %v352, %v464
    %v466 = vrot.slane %v249, %v465
    %v467 = vsel %vm357, %v466, %v462
    %v468 = vlaneseq
    %v469 = vshrl.u32 %v468, 7
    %v470 = vsub.s32 %v359, %v469
    %v471 = vrot.slane %v252, %v470
    %v472 = vsel %vm364, %v471, %v467
    %v473 = vlaneseq
    %v474 = vshrl.u32 %v473, 7
    %v475 = vsub.s32 %v366, %v474
    %v476 = vrot.slane %v255, %v475
    %v477 = vsel %vm371, %v476, %v472
    %v478 = vlaneseq
    %v479 = vshrl.u32 %v478, 7
    %v480 = vsub.s32 %v373, %v479
    %v481 = vrot.slane %v258, %v480
    %v482 = vsel %vm378, %v481, %v477
    %v483 = vlaneseq
    %v484 = vshrl.u32 %v483, 7
    %v485 = vsub.s32 %v380, %v484
    %v486 = vrot.slane %v261, %v485
    %v487 = vsel %vm385, %v486, %v482
    %v488 = vlaneseq
    %v489 = vshrl.u32 %v488, 7
    %v490 = vsub.s32 %v387, %v489
    %v491 = vrot.slane %v264, %v490
    %v492 = vsel %vm392, %v491, %v487
    %v493 = vlaneseq
    %v494 = vshrl.u32 %v493, 7
    %v495 = vsub.s32 %v394, %v494
    %v496 = vrot.slane %v267, %v495
    %v497 = vsel %vm399, %v496, %v492
    %v499 = vsel %vm275, %v497, 0.0
    %v500 = vadd.f32 %v402, 1e-07
    %v501 = vlog2.pop %v500
    %v502 = vmul.f32 %v501, 0.6931472
    %v503 = vsub.f32 0.0, %v502
    %v504 = vsub.f32 1.0, %v402
    %v505 = vmax.f32 %v504, 0.0
    %v506 = vmul.f32 %v505, %v505
    %v507 = vmul.f32 %v506, %v503
    %v508 = vmul.f32 %v507, %v499
    %vm509 = vcmask 1040384
    %v510 = vsel %vm509, %v508, 0.0
    %511 = vadd.xlane.f32.xlu0 %v510
    %v512 = vpop.xlane.xlu0 %511
    %v513 = vrot.slane %v512, 4
    %v514 = vadd.f32 %v512, %v513
    %v515 = vrot.slane %v514, 2
    %v516 = vadd.f32 %v514, %v515
    %v517 = vrot.slane %v516, 1
    %v518 = vadd.f32 %v516, %v517
    %s519 = vtos %v518
    %s520 = sadd.f32 %s519, 0.0
    %v521 = vstv %s520
    %522 = vst [vmem:[#allocation5] sm:$0x1] %v521
    // Predicated region
    $region18: #{tpu_custom_call.1} parent=1 // pred_check
      _
    $region19: #{tpu_custom_call.1} parent=1 // pred_check_branch
      %524 = sbr.rel (0) target = $region21
    $region20: #{tpu_custom_call.1} parent=1 // pred_region
      %s526 = ssub.s32 16, 16
      %527 = vsyncadd [#allocation4], %s526
      %s529 = sshll.u32 [#allocation5], 4
      %s530 = int_to_ptr.vmem [resolvable:$true] %s529
      %532 = dma.vmem_to_hbm [thread:$0]  %s530, 16, %s3, [#allocation4]
    $region21: #{tpu_custom_call.1} parent=1 // pred_fallthru
      _
    // Predicated region
    $region22: #{tpu_custom_call.1} parent=1 // pred_check
      _
    $region23: #{tpu_custom_call.1} parent=1 // pred_check_branch
      %534 = sbr.rel (0) target = $region25
    $region24: #{tpu_custom_call.1} parent=1 // pred_region
      %535 = dma.done [#allocation4], 16
    $region25: #{tpu_custom_call.1} parent=1 // pred_fallthru
      _
    %536 = vsyncpa [#allocation3], 1
    %537 = vsyncpa [#allocation4], 1

</llo_original>
